<compile_context>
chip_gen: v7x
topology: tpu7x:2x2x1
jax: 0.10.0
libtpu: 0.0.40
codegen_flags: <defaults>
</compile_context>

<pallas_src>
import jax
import jax.numpy as jnp
from jax.experimental import pallas as pl
from jax.experimental.pallas import tpu as pltpu

IN_FEATURES = 1536
OUT_FEATURES = 196        # = 14 * 14
OUT_PADDED = 256          # pad 196 -> 2 * 128 lanes for unmasked stores


def _round_up(n, m):
    return ((n + m - 1) // m) * m


def linear_kernel(x_ref, w_ref, b_ref, o_ref):
    # x_ref: (tm, 1536) f32   w_ref: (1536, 256) bf16
    # b_ref: (1, 256)   f32   o_ref: (tm, 256)   f32
    x = x_ref[...].astype(jnp.bfloat16)            # cast on-chip, under the DMA
    acc = jnp.dot(x, w_ref[...], preferred_element_type=jnp.float32)
    o_ref[...] = (acc + b_ref[...]).astype(o_ref.dtype)


def prepare_params(w_torch, b):
    """w_torch: (196, 1536) f32 (PyTorch layout), b: (196,) f32.

    Returns (w_pad, b_pad): weight as (1536, 256) bf16 (transposed + lane-padded),
    bias as (1, 256) f32 (lane-padded). Padded columns are zero.
    """
    w_t = jnp.transpose(w_torch)                                   # (1536, 196)
    w_pad = jnp.zeros((IN_FEATURES, OUT_PADDED), jnp.float32)
    w_pad = w_pad.at[:, :OUT_FEATURES].set(w_t).astype(jnp.bfloat16)
    b_pad = jnp.zeros((1, OUT_PADDED), jnp.float32)
    b_pad = b_pad.at[0, :OUT_FEATURES].set(b)
    return w_pad, b_pad


def my_model_forward(x, w_pad, b_pad):
    """Module-faithful forward: x (1536,) f32 -> (14, 14) f32.

    Grid-free pallas_call with explicit VMEM specs: everything lives in VMEM
    for the single step, no grid pipelining / double-buffering machinery.
    """
    # TODO(synk): if this single-vector path is hit repeatedly, persist the bf16
    # weight in VMEM across calls (P10 cross-call semaphore/VMEM future) or batch
    # the incoming vectors; per-call latency is dominated by the 768 KiB weight DMA.
    x2 = x.reshape(1, IN_FEATURES)
    vmem_spec = pl.BlockSpec(memory_space=pltpu.MemorySpace.VMEM)
    out = pl.pallas_call(
        linear_kernel,
        out_shape=jax.ShapeDtypeStruct((1, OUT_PADDED), jnp.float32),
        in_specs=[vmem_spec, vmem_spec, vmem_spec],
        out_specs=vmem_spec,
    )(x2, w_pad, b_pad)
    return out[0, :OUT_FEATURES].reshape(14, 14)


def _pick_tm(B, tm_max=512):
    """Sublane-aligned M tile: as large as possible (up to tm_max) while
    keeping >= 2 grid steps so the 'parallel' batch axis can use both TCs."""
    half = _round_up(pl.cdiv(B, 2), 8)
    return max(8, min(tm_max, half))


def _build_batched_call(B, tm, out_dtype, buffered_weight):
    grid = (pl.cdiv(B, tm),)
    const_kwargs = {"pipeline_mode": pl.Buffered(1)} if buffered_weight else {}
    in_specs = [
        pl.BlockSpec((tm, IN_FEATURES), lambda i: (i, 0)),
        # Constant block index -> weight/bias stay VMEM-resident across batch.
        pl.BlockSpec((IN_FEATURES, OUT_PADDED), lambda i: (0, 0), **const_kwargs),
        pl.BlockSpec((1, OUT_PADDED), lambda i: (0, 0), **const_kwargs),
    ]
    return pl.pallas_call(
        linear_kernel,
        out_shape=jax.ShapeDtypeStruct((_round_up(B, tm), OUT_PADDED), out_dtype),
        grid_spec=pltpu.PrefetchScalarGridSpec(
            num_scalar_prefetch=0,
            grid=grid,
            in_specs=in_specs,
            out_specs=pl.BlockSpec((tm, OUT_PADDED), lambda i: (i, 0)),
        ),
        compiler_params=pltpu.CompilerParams(
            dimension_semantics=("parallel",)   # shard batch across TCs (v7x)
        ),
    )


def my_model_forward_batched(xb, w_pad, b_pad, tm=512, out_dtype=jnp.float32,
                             return_padded=False):
    """Throughput path: xb (B, 1536) f32 -> (B, 196).

    One pallas_call for the whole batch; activations are read once as f32 and
    cast to bf16 inside the kernel; the bf16 weight tile is fetched once and
    reused for all grid steps.
    """
    B = xb.shape[0]
    tm = _pick_tm(B, tm_max=tm)
    try:
        call = _build_batched_call(B, tm, out_dtype, buffered_weight=True)
        out = call(xb, w_pad, b_pad)
    except Exception:
        # pipeline_mode not supported by this JAX build -> plain specs
        # (constant index_map still avoids per-step weight re-fetch).
        call = _build_batched_call(B, tm, out_dtype, buffered_weight=False)
        out = call(xb, w_pad, b_pad)

    if return_padded:
        return out                       # (round_up(B, tm), 256), zero-padded cols
    return out[:B, :OUT_FEATURES]


if __name__ == "__main__":
    key = jax.random.PRNGKey(0)
    kx, kw, kb, kxb = jax.random.split(key, 4)

    # Deterministic synthetic parameters (mimic nn.Linear's uniform init range),
    # stored in PyTorch's (out_features, in_features) layout.
    bound = 1.0 / (IN_FEATURES ** 0.5)
    w_torch = jax.random.uniform(
        kw, (OUT_FEATURES, IN_FEATURES), jnp.float32, minval=-bound, maxval=bound
    )
    b = jax.random.uniform(
        kb, (OUT_FEATURES,), jnp.float32, minval=-bound, maxval=bound
    )
    w_pad, b_pad = prepare_params(w_torch, b)

    # 1) Module-faithful forward: single 1536-vector -> (14, 14).
    x = jax.random.normal(kx, (IN_FEATURES,), jnp.float32)
    y = jax.block_until_ready(my_model_forward(x, w_pad, b_pad))
    y_ref = (x @ w_torch.T + b).reshape(14, 14)
    assert y.shape == (14, 14)
    assert jnp.allclose(y, y_ref, atol=5e-2, rtol=5e-2)  # bf16 MXU inputs

    # 2) Batched throughput path: many vectors share one launch + weight DMA.
    B = 64
    xb = jax.random.normal(kxb, (B, IN_FEATURES), jnp.float32)
    yb = jax.block_until_ready(my_model_forward_batched(xb, w_pad, b_pad))
    yb_ref = xb @ w_torch.T + b
    assert yb.shape == (B, OUT_FEATURES)
    assert jnp.allclose(yb, yb_ref, atol=5e-2, rtol=5e-2)

    print("KERNEL_OK")
</pallas_src>

<mosaic_0001>
module attributes {stable_mosaic.version = 11 : i64} {
  func.func @linear_kernel(%arg0: memref<1x1536xf32, #tpu.memory_space<vmem>>, %arg1: memref<1536x256xbf16, #tpu.memory_space<vmem>>, %arg2: memref<1x256xf32, #tpu.memory_space<vmem>>, %arg3: memref<1x256xf32, #tpu.memory_space<vmem>>) attributes {dimension_semantics = [], scalar_prefetch = 0 : i64, scratch_operands = 0 : i64, tpu.core_type = #tpu.core_type<tc>} {
    %c0 = arith.constant 0 : index
    %c0_0 = arith.constant 0 : index
    %0 = vector.load %arg0[%c0, %c0_0] : memref<1x1536xf32, #tpu.memory_space<vmem>>, vector<1x1536xf32>
    %1 = arith.truncf %0 : vector<1x1536xf32> to vector<1x1536xbf16>
    %c0_1 = arith.constant 0 : index
    %c0_2 = arith.constant 0 : index
    %2 = vector.load %arg1[%c0_1, %c0_2] : memref<1536x256xbf16, #tpu.memory_space<vmem>>, vector<1536x256xbf16>
    %cst = arith.constant dense<0.000000e+00> : vector<1x256xf32>
    %3 = tpu.matmul %1, %2, %cst {dimension_numbers = #tpu.dot_dimension_numbers<[1], [0], [0], [1], [0, 0, 1, 1], [], []>} : vector<1x1536xbf16>, vector<1536x256xbf16>, vector<1x256xf32> -> vector<1x256xf32>
    %c0_3 = arith.constant 0 : index
    %c0_4 = arith.constant 0 : index
    %4 = vector.load %arg2[%c0_3, %c0_4] : memref<1x256xf32, #tpu.memory_space<vmem>>, vector<1x256xf32>
    %5 = arith.addf %3, %4 : vector<1x256xf32>
    %c0_5 = arith.constant 0 : index
    %c0_6 = arith.constant 0 : index
    %6 = vector.load %arg3[%c0_5, %c0_6] : memref<1x256xf32, #tpu.memory_space<vmem>>, vector<1x256xf32>
    tpu.vector_store %arg3[%c0_5, %c0_6], %5 {strides = array<i32>} : memref<1x256xf32, #tpu.memory_space<vmem>>, vector<1x256xf32>,
    return
  }
}

</mosaic_0001>

<llo_original>
// kernel: tpu_custom_call.1
$region0: #{tpu_custom_call.1}
  #allocation0 [shape = 'u32[]', space=smem, size = 0x4, offset = 0x4, fixed_abs, tag = 'smem constant byte address 0x4 - core index']
  #allocation1 [shape = 'u32[144,128]{1,0:T(1,128)}', space=vmem, size = 0x12000, scoped, tag = 'internal scratch']
  %s0 = inlined_call_operand.hbm [shape: f32[1,1536], index: 0, kind: input, shape index: {}]
  %s1 = inlined_call_operand.hbm [shape: bf16[1536,256], index: 1, kind: input, shape index: {}]
  %s2 = inlined_call_operand.vmem [shape: f32[1,256], index: 2, kind: input, shape index: {}]
  %s3 = inlined_call_operand.hbm [shape: f32[1,256], index: 3, kind: output, shape index: {}]
  %s4 = sld [smem:[#allocation0]]
  $region30: #{tpu_custom_call.1} parent=0
    _
  %s6 = ssub.s32 1, %s4
  %s7 = scalar_select 0, %s6, %s4
  $region1: #{tpu_custom_call.1} parent=0
    #allocation2 [shape = 'u8[6144]{0}', space=vmem, size = 0x1800, scoped, tag = 'input window, operand 0, single buffered']
    #allocation3 [shape = 's32[1]{0}', space=sflag, size = 0x4, scoped, tag = 'scoped memory for tpu_custom_call.1']
    #allocation4 [shape = 's32[1]{0}', space=sflag, size = 0x4, scoped, tag = 'scoped memory for tpu_custom_call.1']
    #allocation5 [shape = 'u8[786432]{0}', space=vmem, size = 0xc0000, scoped, tag = 'input window, operand 1, single buffered']
    #allocation6 [shape = 's32[1]{0}', space=sflag, size = 0x4, scoped, tag = 'scoped memory for tpu_custom_call.1']
    #allocation7 [shape = 'u8[1024]{0}', space=vmem, size = 0x400, scoped, tag = 'output window, operand 0, single buffered']
    %8 = vsyncpa [#allocation3], 0
    %9 = vsyncpa [#allocation6], 0
    %10 = vsyncpa [#allocation4], 0
    // Predicated region
    $region2: #{tpu_custom_call.1} parent=1 // pred_check
      _
    $region3: #{tpu_custom_call.1} parent=1 // pred_check_branch
      %12 = sbr.rel (0) target = $region5
    $region4: #{tpu_custom_call.1} parent=1 // pred_region
      %s14 = ssub.s32 192, 192
      %15 = vsyncadd [#allocation3], %s14
      %s17 = sshll.u32 [#allocation2], 4
      %s18 = int_to_ptr.vmem [resolvable:$true] %s17
      %20 = dma.hbm_to_vmem [thread:$0]  %s0, 192, %s18, [#allocation3]
    $region5: #{tpu_custom_call.1} parent=1 // pred_fallthru
      _
    // Predicated region
    $region6: #{tpu_custom_call.1} parent=1 // pred_check
      _
    $region7: #{tpu_custom_call.1} parent=1 // pred_check_branch
      %22 = sbr.rel (0) target = $region9
    $region8: #{tpu_custom_call.1} parent=1 // pred_region
      %s24 = ssub.s32 24576, 24576
      %25 = vsyncadd [#allocation6], %s24
      %s26 = sshll.u32 [#allocation5], 4
      %s27 = int_to_ptr.vmem [resolvable:$true] %s26
      %32 = dma.hbm_to_vmem [thread:$0]  %s1, 24576, %s27, [#allocation6], 128, 128, 8
    $region9: #{tpu_custom_call.1} parent=1 // pred_fallthru
      _
    // Predicated region
    $region10: #{tpu_custom_call.1} parent=1 // pred_check
      _
    $region11: #{tpu_custom_call.1} parent=1 // pred_check_branch
      %34 = sbr.rel (0) target = $region13
    $region12: #{tpu_custom_call.1} parent=1 // pred_region
      _
    $region13: #{tpu_custom_call.1} parent=1 // pred_fallthru
      _
    // Predicated region
    $region14: #{tpu_custom_call.1} parent=1 // pred_check
      _
    $region15: #{tpu_custom_call.1} parent=1 // pred_check_branch
      %36 = sbr.rel (0) target = $region17
    $region16: #{tpu_custom_call.1} parent=1 // pred_region
      %37 = dma.done [#allocation3], 192
    $region17: #{tpu_custom_call.1} parent=1 // pred_fallthru
      _
    // Predicated region
    $region18: #{tpu_custom_call.1} parent=1 // pred_check
      _
    $region19: #{tpu_custom_call.1} parent=1 // pred_check_branch
      %39 = sbr.rel (0) target = $region21
    $region20: #{tpu_custom_call.1} parent=1 // pred_region
      %40 = dma.done [#allocation6], 24576
    $region21: #{tpu_custom_call.1} parent=1 // pred_fallthru
      _
    %v41 = vld [vmem:[#allocation2] sm:$0xff]
    %v42 = vld [vmem:[#allocation2 + $0x8] sm:$0xf]
    %v45 = vlaneseq
    %v46 = vshrl.u32 %v45, 7
    %v47 = vsub.s32 0, %v46
    %v48 = vrot.slane %v41, %v47
    %v49 = vlaneseq
    %v50 = vshrl.u32 %v49, 7
    %v51 = vsub.s32 1, %v50
    %v52 = vrot.slane %v41, %v51
    %v53 = vlaneseq
    %v54 = vshrl.u32 %v53, 7
    %v55 = vsub.s32 2, %v54
    %v56 = vrot.slane %v41, %v55
    %v57 = vlaneseq
    %v58 = vshrl.u32 %v57, 7
    %v59 = vsub.s32 3, %v58
    %v60 = vrot.slane %v41, %v59
    %v61 = vlaneseq
    %v62 = vshrl.u32 %v61, 7
    %v63 = vsub.s32 4, %v62
    %v64 = vrot.slane %v41, %v63
    %v65 = vlaneseq
    %v66 = vshrl.u32 %v65, 7
    %v67 = vsub.s32 5, %v66
    %v68 = vrot.slane %v41, %v67
    %v69 = vlaneseq
    %v70 = vshrl.u32 %v69, 7
    %v71 = vsub.s32 6, %v70
    %v72 = vrot.slane %v41, %v71
    %v73 = vlaneseq
    %v74 = vshrl.u32 %v73, 7
    %v75 = vsub.s32 7, %v74
    %v76 = vrot.slane %v41, %v75
    %v77 = vlaneseq
    %v78 = vshrl.u32 %v77, 7
    %v79 = vsub.s32 0, %v78
    %v80 = vrot.slane %v42, %v79
    %v81 = vlaneseq
    %v82 = vshrl.u32 %v81, 7
    %v83 = vsub.s32 1, %v82
    %v84 = vrot.slane %v42, %v83
    %v85 = vlaneseq
    %v86 = vshrl.u32 %v85, 7
    %v87 = vsub.s32 2, %v86
    %v88 = vrot.slane %v42, %v87
    %v89 = vlaneseq
    %v90 = vshrl.u32 %v89, 7
    %v91 = vsub.s32 3, %v90
    %v92 = vrot.slane %v42, %v91
    %v105 = vpack.c.bf16 %v48, %v48
    %v106 = vpack.c.bf16 %v52, %v52
    %v107 = vpack.c.bf16 %v56, %v56
    %v108 = vpack.c.bf16 %v60, %v60
    %v109 = vpack.c.bf16 %v64, %v64
    %v110 = vpack.c.bf16 %v68, %v68
    %v111 = vpack.c.bf16 %v72, %v72
    %v112 = vpack.c.bf16 %v76, %v76
    %v113 = vpack.c.bf16 %v80, %v80
    %v114 = vpack.c.bf16 %v84, %v84
    %v115 = vpack.c.bf16 %v88, %v88
    %v116 = vpack.c.bf16 %v92, %v92
    %v117 = vld [vmem:[#allocation5] sm:$0xff]
    %v118 = vld [vmem:[#allocation5 + $0x8] sm:$0xff]
    %v119 = vld [vmem:[#allocation5 + $0x10] sm:$0xff]
    %v120 = vld [vmem:[#allocation5 + $0x18] sm:$0xff]
    %v121 = vld [vmem:[#allocation5 + $0x20] sm:$0xff]
    %v122 = vld [vmem:[#allocation5 + $0x28] sm:$0xff]
    %v123 = vld [vmem:[#allocation5 + $0x30] sm:$0xff]
    %v124 = vld [vmem:[#allocation5 + $0x38] sm:$0xff]
    %v125 = vld [vmem:[#allocation5 + $0x40] sm:$0xff]
    %v126 = vld [vmem:[#allocation5 + $0x48] sm:$0xff]
    %v127 = vld [vmem:[#allocation5 + $0x50] sm:$0xff]
    %v128 = vld [vmem:[#allocation5 + $0x58] sm:$0xff]
    %v129 = vld [vmem:[#allocation5 + $0x60] sm:$0xff]
    %v130 = vld [vmem:[#allocation5 + $0x68] sm:$0xff]
    %v131 = vld [vmem:[#allocation5 + $0x70] sm:$0xff]
    %v132 = vld [vmem:[#allocation5 + $0x78] sm:$0xff]
    %v133 = vld [vmem:[#allocation5 + $0x80] sm:$0xff]
    %v134 = vld [vmem:[#allocation5 + $0x88] sm:$0xff]
    %v135 = vld [vmem:[#allocation5 + $0x90] sm:$0xff]
    %v136 = vld [vmem:[#allocation5 + $0x98] sm:$0xff]
    %v137 = vld [vmem:[#allocation5 + $0xa0] sm:$0xff]
    %v138 = vld [vmem:[#allocation5 + $0xa8] sm:$0xff]
    %v139 = vld [vmem:[#allocation5 + $0xb0] sm:$0xff]
    %v140 = vld [vmem:[#allocation5 + $0xb8] sm:$0xff]
    %v141 = vld [vmem:[#allocation5 + $0xc0] sm:$0xff]
    %v142 = vld [vmem:[#allocation5 + $0xc8] sm:$0xff]
    %v143 = vld [vmem:[#allocation5 + $0xd0] sm:$0xff]
    %v144 = vld [vmem:[#allocation5 + $0xd8] sm:$0xff]
    %v145 = vld [vmem:[#allocation5 + $0xe0] sm:$0xff]
    %v146 = vld [vmem:[#allocation5 + $0xe8] sm:$0xff]
    %v147 = vld [vmem:[#allocation5 + $0xf0] sm:$0xff]
    %v148 = vld [vmem:[#allocation5 + $0xf8] sm:$0xff]
    %v149 = vld [vmem:[#allocation5 + $0x100] sm:$0xff]
    %v150 = vld [vmem:[#allocation5 + $0x108] sm:$0xff]
    %v151 = vld [vmem:[#allocation5 + $0x110] sm:$0xff]
    %v152 = vld [vmem:[#allocation5 + $0x118] sm:$0xff]
    %v153 = vld [vmem:[#allocation5 + $0x120] sm:$0xff]
    %v154 = vld [vmem:[#allocation5 + $0x128] sm:$0xff]
    %v155 = vld [vmem:[#allocation5 + $0x130] sm:$0xff]
    %v156 = vld [vmem:[#allocation5 + $0x138] sm:$0xff]
    %v157 = vld [vmem:[#allocation5 + $0x140] sm:$0xff]
    %v158 = vld [vmem:[#allocation5 + $0x148] sm:$0xff]
    %v159 = vld [vmem:[#allocation5 + $0x150] sm:$0xff]
    %v160 = vld [vmem:[#allocation5 + $0x158] sm:$0xff]
    %v161 = vld [vmem:[#allocation5 + $0x160] sm:$0xff]
    %v162 = vld [vmem:[#allocation5 + $0x168] sm:$0xff]
    %v163 = vld [vmem:[#allocation5 + $0x170] sm:$0xff]
    %v164 = vld [vmem:[#allocation5 + $0x178] sm:$0xff]
    %v165 = vld [vmem:[#allocation5 + $0x180] sm:$0xff]
    %v166 = vld [vmem:[#allocation5 + $0x188] sm:$0xff]
    %v167 = vld [vmem:[#allocation5 + $0x190] sm:$0xff]
    %v168 = vld [vmem:[#allocation5 + $0x198] sm:$0xff]
    %v169 = vld [vmem:[#allocation5 + $0x1a0] sm:$0xff]
    %v170 = vld [vmem:[#allocation5 + $0x1a8] sm:$0xff]
    %v171 = vld [vmem:[#allocation5 + $0x1b0] sm:$0xff]
    %v172 = vld [vmem:[#allocation5 + $0x1b8] sm:$0xff]
    %v173 = vld [vmem:[#allocation5 + $0x1c0] sm:$0xff]
    %v174 = vld [vmem:[#allocation5 + $0x1c8] sm:$0xff]
    %v175 = vld [vmem:[#allocation5 + $0x1d0] sm:$0xff]
    %v176 = vld [vmem:[#allocation5 + $0x1d8] sm:$0xff]
    %v177 = vld [vmem:[#allocation5 + $0x1e0] sm:$0xff]
    %v178 = vld [vmem:[#allocation5 + $0x1e8] sm:$0xff]
    %v179 = vld [vmem:[#allocation5 + $0x1f0] sm:$0xff]
    %v180 = vld [vmem:[#allocation5 + $0x1f8] sm:$0xff]
    %v181 = vld [vmem:[#allocation5 + $0x200] sm:$0xff]
    %v182 = vld [vmem:[#allocation5 + $0x208] sm:$0xff]
    %v183 = vld [vmem:[#allocation5 + $0x210] sm:$0xff]
    %v184 = vld [vmem:[#allocation5 + $0x218] sm:$0xff]
    %v185 = vld [vmem:[#allocation5 + $0x220] sm:$0xff]
    %v186 = vld [vmem:[#allocation5 + $0x228] sm:$0xff]
    %v187 = vld [vmem:[#allocation5 + $0x230] sm:$0xff]
    %v188 = vld [vmem:[#allocation5 + $0x238] sm:$0xff]
    %v189 = vld [vmem:[#allocation5 + $0x240] sm:$0xff]
    %v190 = vld [vmem:[#allocation5 + $0x248] sm:$0xff]
    %v191 = vld [vmem:[#allocation5 + $0x250] sm:$0xff]
    %v192 = vld [vmem:[#allocation5 + $0x258] sm:$0xff]
    %v193 = vld [vmem:[#allocation5 + $0x260] sm:$0xff]
    %v194 = vld [vmem:[#allocation5 + $0x268] sm:$0xff]
    %v195 = vld [vmem:[#allocation5 + $0x270] sm:$0xff]
    %v196 = vld [vmem:[#allocation5 + $0x278] sm:$0xff]
    %v197 = vld [vmem:[#allocation5 + $0x280] sm:$0xff]
    %v198 = vld [vmem:[#allocation5 + $0x288] sm:$0xff]
    %v199 = vld [vmem:[#allocation5 + $0x290] sm:$0xff]
    %v200 = vld [vmem:[#allocation5 + $0x298] sm:$0xff]
    %v201 = vld [vmem:[#allocation5 + $0x2a0] sm:$0xff]
    %v202 = vld [vmem:[#allocation5 + $0x2a8] sm:$0xff]
    %v203 = vld [vmem:[#allocation5 + $0x2b0] sm:$0xff]
    %v204 = vld [vmem:[#allocation5 + $0x2b8] sm:$0xff]
    %v205 = vld [vmem:[#allocation5 + $0x2c0] sm:$0xff]
    %v206 = vld [vmem:[#allocation5 + $0x2c8] sm:$0xff]
    %v207 = vld [vmem:[#allocation5 + $0x2d0] sm:$0xff]
    %v208 = vld [vmem:[#allocation5 + $0x2d8] sm:$0xff]
    %v209 = vld [vmem:[#allocation5 + $0x2e0] sm:$0xff]
    %v210 = vld [vmem:[#allocation5 + $0x2e8] sm:$0xff]
    %v211 = vld [vmem:[#allocation5 + $0x2f0] sm:$0xff]
    %v212 = vld [vmem:[#allocation5 + $0x2f8] sm:$0xff]
    %v213 = vld [vmem:[#allocation5 + $0x300] sm:$0xff]
    %v214 = vld [vmem:[#allocation5 + $0x308] sm:$0xff]
    %v215 = vld [vmem:[#allocation5 + $0x310] sm:$0xff]
    %v216 = vld [vmem:[#allocation5 + $0x318] sm:$0xff]
    %v217 = vld [vmem:[#allocation5 + $0x320] sm:$0xff]
    %v218 = vld [vmem:[#allocation5 + $0x328] sm:$0xff]
    %v219 = vld [vmem:[#allocation5 + $0x330] sm:$0xff]
    %v220 = vld [vmem:[#allocation5 + $0x338] sm:$0xff]
    %v221 = vld [vmem:[#allocation5 + $0x340] sm:$0xff]
    %v222 = vld [vmem:[#allocation5 + $0x348] sm:$0xff]
    %v223 = vld [vmem:[#allocation5 + $0x350] sm:$0xff]
    %v224 = vld [vmem:[#allocation5 + $0x358] sm:$0xff]
    %v225 = vld [vmem:[#allocation5 + $0x360] sm:$0xff]
    %v226 = vld [vmem:[#allocation5 + $0x368] sm:$0xff]
    %v227 = vld [vmem:[#allocation5 + $0x370] sm:$0xff]
    %v228 = vld [vmem:[#allocation5 + $0x378] sm:$0xff]
    %v229 = vld [vmem:[#allocation5 + $0x380] sm:$0xff]
    %v230 = vld [vmem:[#allocation5 + $0x388] sm:$0xff]
    %v231 = vld [vmem:[#allocation5 + $0x390] sm:$0xff]
    %v232 = vld [vmem:[#allocation5 + $0x398] sm:$0xff]
    %v233 = vld [vmem:[#allocation5 + $0x3a0] sm:$0xff]
    %v234 = vld [vmem:[#allocation5 + $0x3a8] sm:$0xff]
    %v235 = vld [vmem:[#allocation5 + $0x3b0] sm:$0xff]
    %v236 = vld [vmem:[#allocation5 + $0x3b8] sm:$0xff]
    %v237 = vld [vmem:[#allocation5 + $0x3c0] sm:$0xff]
    %v238 = vld [vmem:[#allocation5 + $0x3c8] sm:$0xff]
    %v239 = vld [vmem:[#allocation5 + $0x3d0] sm:$0xff]
    %v240 = vld [vmem:[#allocation5 + $0x3d8] sm:$0xff]
    %v241 = vld [vmem:[#allocation5 + $0x3e0] sm:$0xff]
    %v242 = vld [vmem:[#allocation5 + $0x3e8] sm:$0xff]
    %v243 = vld [vmem:[#allocation5 + $0x3f0] sm:$0xff]
    %v244 = vld [vmem:[#allocation5 + $0x3f8] sm:$0xff]
    %v245 = vld [vmem:[#allocation5 + $0x400] sm:$0xff]
    %v246 = vld [vmem:[#allocation5 + $0x408] sm:$0xff]
    %v247 = vld [vmem:[#allocation5 + $0x410] sm:$0xff]
    %v248 = vld [vmem:[#allocation5 + $0x418] sm:$0xff]
    %v249 = vld [vmem:[#allocation5 + $0x420] sm:$0xff]
    %v250 = vld [vmem:[#allocation5 + $0x428] sm:$0xff]
    %v251 = vld [vmem:[#allocation5 + $0x430] sm:$0xff]
    %v252 = vld [vmem:[#allocation5 + $0x438] sm:$0xff]
    %v253 = vld [vmem:[#allocation5 + $0x440] sm:$0xff]
    %v254 = vld [vmem:[#allocation5 + $0x448] sm:$0xff]
    %v255 = vld [vmem:[#allocation5 + $0x450] sm:$0xff]
    %v256 = vld [vmem:[#allocation5 + $0x458] sm:$0xff]
    %v257 = vld [vmem:[#allocation5 + $0x460] sm:$0xff]
    %v258 = vld [vmem:[#allocation5 + $0x468] sm:$0xff]
    %v259 = vld [vmem:[#allocation5 + $0x470] sm:$0xff]
    %v260 = vld [vmem:[#allocation5 + $0x478] sm:$0xff]
    %v261 = vld [vmem:[#allocation5 + $0x480] sm:$0xff]
    %v262 = vld [vmem:[#allocation5 + $0x488] sm:$0xff]
    %v263 = vld [vmem:[#allocation5 + $0x490] sm:$0xff]
    %v264 = vld [vmem:[#allocation5 + $0x498] sm:$0xff]
    %v265 = vld [vmem:[#allocation5 + $0x4a0] sm:$0xff]
    %v266 = vld [vmem:[#allocation5 + $0x4a8] sm:$0xff]
    %v267 = vld [vmem:[#allocation5 + $0x4b0] sm:$0xff]
    %v268 = vld [vmem:[#allocation5 + $0x4b8] sm:$0xff]
    %v269 = vld [vmem:[#allocation5 + $0x4c0] sm:$0xff]
    %v270 = vld [vmem:[#allocation5 + $0x4c8] sm:$0xff]
    %v271 = vld [vmem:[#allocation5 + $0x4d0] sm:$0xff]
    %v272 = vld [vmem:[#allocation5 + $0x4d8] sm:$0xff]
    %v273 = vld [vmem:[#allocation5 + $0x4e0] sm:$0xff]
    %v274 = vld [vmem:[#allocation5 + $0x4e8] sm:$0xff]
    %v275 = vld [vmem:[#allocation5 + $0x4f0] sm:$0xff]
    %v276 = vld [vmem:[#allocation5 + $0x4f8] sm:$0xff]
    %v277 = vld [vmem:[#allocation5 + $0x500] sm:$0xff]
    %v278 = vld [vmem:[#allocation5 + $0x508] sm:$0xff]
    %v279 = vld [vmem:[#allocation5 + $0x510] sm:$0xff]
    %v280 = vld [vmem:[#allocation5 + $0x518] sm:$0xff]
    %v281 = vld [vmem:[#allocation5 + $0x520] sm:$0xff]
    %v282 = vld [vmem:[#allocation5 + $0x528] sm:$0xff]
    %v283 = vld [vmem:[#allocation5 + $0x530] sm:$0xff]
    %v284 = vld [vmem:[#allocation5 + $0x538] sm:$0xff]
    %v285 = vld [vmem:[#allocation5 + $0x540] sm:$0xff]
    %v286 = vld [vmem:[#allocation5 + $0x548] sm:$0xff]
    %v287 = vld [vmem:[#allocation5 + $0x550] sm:$0xff]
    %v288 = vld [vmem:[#allocation5 + $0x558] sm:$0xff]
    %v289 = vld [vmem:[#allocation5 + $0x560] sm:$0xff]
    %v290 = vld [vmem:[#allocation5 + $0x568] sm:$0xff]
    %v291 = vld [vmem:[#allocation5 + $0x570] sm:$0xff]
    %v292 = vld [vmem:[#allocation5 + $0x578] sm:$0xff]
    %v293 = vld [vmem:[#allocation5 + $0x580] sm:$0xff]
    %v294 = vld [vmem:[#allocation5 + $0x588] sm:$0xff]
    %v295 = vld [vmem:[#allocation5 + $0x590] sm:$0xff]
    %v296 = vld [vmem:[#allocation5 + $0x598] sm:$0xff]
    %v297 = vld [vmem:[#allocation5 + $0x5a0] sm:$0xff]
    %v298 = vld [vmem:[#allocation5 + $0x5a8] sm:$0xff]
    %v299 = vld [vmem:[#allocation5 + $0x5b0] sm:$0xff]
    %v300 = vld [vmem:[#allocation5 + $0x5b8] sm:$0xff]
    %v301 = vld [vmem:[#allocation5 + $0x5c0] sm:$0xff]
    %v302 = vld [vmem:[#allocation5 + $0x5c8] sm:$0xff]
    %v303 = vld [vmem:[#allocation5 + $0x5d0] sm:$0xff]
    %v304 = vld [vmem:[#allocation5 + $0x5d8] sm:$0xff]
    %v305 = vld [vmem:[#allocation5 + $0x5e0] sm:$0xff]
    %v306 = vld [vmem:[#allocation5 + $0x5e8] sm:$0xff]
    %v307 = vld [vmem:[#allocation5 + $0x5f0] sm:$0xff]
    %v308 = vld [vmem:[#allocation5 + $0x5f8] sm:$0xff]
    %v309 = vld [vmem:[%s2] sm:$0x3]
    %v502 = vunpack.c.l.b16 %v117
    %v503 = vunpack.c.h.b16 %v117
    %v504 = vunpack.c.l.b16 %v118
    %v505 = vunpack.c.h.b16 %v118
    %v506 = vunpack.c.l.b16 %v119
    %v507 = vunpack.c.h.b16 %v119
    %v508 = vunpack.c.l.b16 %v120
    %v509 = vunpack.c.h.b16 %v120
    %v510 = vunpack.c.l.b16 %v121
    %v511 = vunpack.c.h.b16 %v121
    %v512 = vunpack.c.l.b16 %v122
    %v513 = vunpack.c.h.b16 %v122
    %v514 = vunpack.c.l.b16 %v123
    %v515 = vunpack.c.h.b16 %v123
    %v516 = vunpack.c.l.b16 %v124
    %v517 = vunpack.c.h.b16 %v124
    %v518 = vunpack.c.l.b16 %v125
    %v519 = vunpack.c.h.b16 %v125
    %v520 = vunpack.c.l.b16 %v126
    %v521 = vunpack.c.h.b16 %v126
    %v522 = vunpack.c.l.b16 %v127
    %v523 = vunpack.c.h.b16 %v127
    %v524 = vunpack.c.l.b16 %v128
    %v525 = vunpack.c.h.b16 %v128
    %v526 = vunpack.c.l.b16 %v129
    %v527 = vunpack.c.h.b16 %v129
    %v528 = vunpack.c.l.b16 %v130
    %v529 = vunpack.c.h.b16 %v130
    %v530 = vunpack.c.l.b16 %v131
    %v531 = vunpack.c.h.b16 %v131
    %v532 = vunpack.c.l.b16 %v132
    %v533 = vunpack.c.h.b16 %v132
    %v534 = vunpack.c.l.b16 %v133
    %v535 = vunpack.c.h.b16 %v133
    %v536 = vunpack.c.l.b16 %v134
    %v537 = vunpack.c.h.b16 %v134
    %v538 = vunpack.c.l.b16 %v135
    %v539 = vunpack.c.h.b16 %v135
    %v540 = vunpack.c.l.b16 %v136
    %v541 = vunpack.c.h.b16 %v136
    %v542 = vunpack.c.l.b16 %v137
    %v543 = vunpack.c.h.b16 %v137
    %v544 = vunpack.c.l.b16 %v138
    %v545 = vunpack.c.h.b16 %v138
    %v546 = vunpack.c.l.b16 %v139
    %v547 = vunpack.c.h.b16 %v139
    %v548 = vunpack.c.l.b16 %v140
    %v549 = vunpack.c.h.b16 %v140
    %v550 = vunpack.c.l.b16 %v141
    %v551 = vunpack.c.h.b16 %v141
    %v552 = vunpack.c.l.b16 %v142
    %v553 = vunpack.c.h.b16 %v142
    %v554 = vunpack.c.l.b16 %v143
    %v555 = vunpack.c.h.b16 %v143
    %v556 = vunpack.c.l.b16 %v144
    %v557 = vunpack.c.h.b16 %v144
    %v558 = vunpack.c.l.b16 %v145
    %v559 = vunpack.c.h.b16 %v145
    %v560 = vunpack.c.l.b16 %v146
    %v561 = vunpack.c.h.b16 %v146
    %v562 = vunpack.c.l.b16 %v147
    %v563 = vunpack.c.h.b16 %v147
    %v564 = vunpack.c.l.b16 %v148
    %v565 = vunpack.c.h.b16 %v148
    %v566 = vunpack.c.l.b16 %v149
    %v567 = vunpack.c.h.b16 %v149
    %v568 = vunpack.c.l.b16 %v150
    %v569 = vunpack.c.h.b16 %v150
    %v570 = vunpack.c.l.b16 %v151
    %v571 = vunpack.c.h.b16 %v151
    %v572 = vunpack.c.l.b16 %v152
    %v573 = vunpack.c.h.b16 %v152
    %v574 = vunpack.c.l.b16 %v153
    %v575 = vunpack.c.h.b16 %v153
    %v576 = vunpack.c.l.b16 %v154
    %v577 = vunpack.c.h.b16 %v154
    %v578 = vunpack.c.l.b16 %v155
    %v579 = vunpack.c.h.b16 %v155
    %v580 = vunpack.c.l.b16 %v156
    %v581 = vunpack.c.h.b16 %v156
    %v582 = vunpack.c.l.b16 %v157
    %v583 = vunpack.c.h.b16 %v157
    %v584 = vunpack.c.l.b16 %v158
    %v585 = vunpack.c.h.b16 %v158
    %v586 = vunpack.c.l.b16 %v159
    %v587 = vunpack.c.h.b16 %v159
    %v588 = vunpack.c.l.b16 %v160
    %v589 = vunpack.c.h.b16 %v160
    %v590 = vunpack.c.l.b16 %v161
    %v591 = vunpack.c.h.b16 %v161
    %v592 = vunpack.c.l.b16 %v162
    %v593 = vunpack.c.h.b16 %v162
    %v594 = vunpack.c.l.b16 %v163
    %v595 = vunpack.c.h.b16 %v163
    %v596 = vunpack.c.l.b16 %v164
    %v597 = vunpack.c.h.b16 %v164
    %v598 = vunpack.c.l.b16 %v165
    %v599 = vunpack.c.h.b16 %v165
    %v600 = vunpack.c.l.b16 %v166
    %v601 = vunpack.c.h.b16 %v166
    %v602 = vunpack.c.l.b16 %v167
    %v603 = vunpack.c.h.b16 %v167
    %v604 = vunpack.c.l.b16 %v168
    %v605 = vunpack.c.h.b16 %v168
    %v606 = vunpack.c.l.b16 %v169
    %v607 = vunpack.c.h.b16 %v169
    %v608 = vunpack.c.l.b16 %v170
    %v609 = vunpack.c.h.b16 %v170
    %v610 = vunpack.c.l.b16 %v171
    %v611 = vunpack.c.h.b16 %v171
    %v612 = vunpack.c.l.b16 %v172
    %v613 = vunpack.c.h.b16 %v172
    %v614 = vunpack.c.l.b16 %v173
    %v615 = vunpack.c.h.b16 %v173
    %v616 = vunpack.c.l.b16 %v174
    %v617 = vunpack.c.h.b16 %v174
    %v618 = vunpack.c.l.b16 %v175
    %v619 = vunpack.c.h.b16 %v175
    %v620 = vunpack.c.l.b16 %v176
    %v621 = vunpack.c.h.b16 %v176
    %v622 = vunpack.c.l.b16 %v177
    %v623 = vunpack.c.h.b16 %v177
    %v624 = vunpack.c.l.b16 %v178
    %v625 = vunpack.c.h.b16 %v178
    %v626 = vunpack.c.l.b16 %v179
    %v627 = vunpack.c.h.b16 %v179
    %v628 = vunpack.c.l.b16 %v180
    %v629 = vunpack.c.h.b16 %v180
    %v630 = vunpack.c.l.b16 %v181
    %v631 = vunpack.c.h.b16 %v181
    %v632 = vunpack.c.l.b16 %v182
    %v633 = vunpack.c.h.b16 %v182
    %v634 = vunpack.c.l.b16 %v183
    %v635 = vunpack.c.h.b16 %v183
    %v636 = vunpack.c.l.b16 %v184
    %v637 = vunpack.c.h.b16 %v184
    %v638 = vunpack.c.l.b16 %v185
    %v639 = vunpack.c.h.b16 %v185
    %v640 = vunpack.c.l.b16 %v186
    %v641 = vunpack.c.h.b16 %v186
    %v642 = vunpack.c.l.b16 %v187
    %v643 = vunpack.c.h.b16 %v187
    %v644 = vunpack.c.l.b16 %v188
    %v645 = vunpack.c.h.b16 %v188
    %v646 = vunpack.c.l.b16 %v189
    %v647 = vunpack.c.h.b16 %v189
    %v648 = vunpack.c.l.b16 %v190
    %v649 = vunpack.c.h.b16 %v190
    %v650 = vunpack.c.l.b16 %v191
    %v651 = vunpack.c.h.b16 %v191
    %v652 = vunpack.c.l.b16 %v192
    %v653 = vunpack.c.h.b16 %v192
    %v654 = vunpack.c.l.b16 %v193
    %v655 = vunpack.c.h.b16 %v193
    %v656 = vunpack.c.l.b16 %v194
    %v657 = vunpack.c.h.b16 %v194
    %v658 = vunpack.c.l.b16 %v195
    %v659 = vunpack.c.h.b16 %v195
    %v660 = vunpack.c.l.b16 %v196
    %v661 = vunpack.c.h.b16 %v196
    %v662 = vunpack.c.l.b16 %v197
    %v663 = vunpack.c.h.b16 %v197
    %v664 = vunpack.c.l.b16 %v198
    %v665 = vunpack.c.h.b16 %v198
    %v666 = vunpack.c.l.b16 %v199
    %v667 = vunpack.c.h.b16 %v199
    %v668 = vunpack.c.l.b16 %v200
    %v669 = vunpack.c.h.b16 %v200
    %v670 = vunpack.c.l.b16 %v201
    %v671 = vunpack.c.h.b16 %v201
    %v672 = vunpack.c.l.b16 %v202
    %v673 = vunpack.c.h.b16 %v202
    %v674 = vunpack.c.l.b16 %v203
    %v675 = vunpack.c.h.b16 %v203
    %v676 = vunpack.c.l.b16 %v204
    %v677 = vunpack.c.h.b16 %v204
    %v678 = vunpack.c.l.b16 %v205
    %v679 = vunpack.c.h.b16 %v205
    %v680 = vunpack.c.l.b16 %v206
    %v681 = vunpack.c.h.b16 %v206
    %v682 = vunpack.c.l.b16 %v207
    %v683 = vunpack.c.h.b16 %v207
    %v684 = vunpack.c.l.b16 %v208
    %v685 = vunpack.c.h.b16 %v208
    %v686 = vunpack.c.l.b16 %v209
    %v687 = vunpack.c.h.b16 %v209
    %v688 = vunpack.c.l.b16 %v210
    %v689 = vunpack.c.h.b16 %v210
    %v690 = vunpack.c.l.b16 %v211
    %v691 = vunpack.c.h.b16 %v211
    %v692 = vunpack.c.l.b16 %v212
    %v693 = vunpack.c.h.b16 %v212
    %v694 = vunpack.c.l.b16 %v213
    %v695 = vunpack.c.h.b16 %v213
    %v696 = vunpack.c.l.b16 %v214
    %v697 = vunpack.c.h.b16 %v214
    %v698 = vunpack.c.l.b16 %v215
    %v699 = vunpack.c.h.b16 %v215
    %v700 = vunpack.c.l.b16 %v216
    %v701 = vunpack.c.h.b16 %v216
    %v702 = vunpack.c.l.b16 %v217
    %v703 = vunpack.c.h.b16 %v217
    %v704 = vunpack.c.l.b16 %v218
    %v705 = vunpack.c.h.b16 %v218
    %v706 = vunpack.c.l.b16 %v219
    %v707 = vunpack.c.h.b16 %v219
    %v708 = vunpack.c.l.b16 %v220
    %v709 = vunpack.c.h.b16 %v220
    %v710 = vunpack.c.l.b16 %v221
    %v711 = vunpack.c.h.b16 %v221
    %v712 = vunpack.c.l.b16 %v222
    %v713 = vunpack.c.h.b16 %v222
    %v714 = vunpack.c.l.b16 %v223
    %v715 = vunpack.c.h.b16 %v223
    %v716 = vunpack.c.l.b16 %v224
    %v717 = vunpack.c.h.b16 %v224
    %v718 = vunpack.c.l.b16 %v225
    %v719 = vunpack.c.h.b16 %v225
    %v720 = vunpack.c.l.b16 %v226
    %v721 = vunpack.c.h.b16 %v226
    %v722 = vunpack.c.l.b16 %v227
    %v723 = vunpack.c.h.b16 %v227
    %v724 = vunpack.c.l.b16 %v228
    %v725 = vunpack.c.h.b16 %v228
    %v726 = vunpack.c.l.b16 %v229
    %v727 = vunpack.c.h.b16 %v229
    %v728 = vunpack.c.l.b16 %v230
    %v729 = vunpack.c.h.b16 %v230
    %v730 = vunpack.c.l.b16 %v231
    %v731 = vunpack.c.h.b16 %v231
    %v732 = vunpack.c.l.b16 %v232
    %v733 = vunpack.c.h.b16 %v232
    %v734 = vunpack.c.l.b16 %v233
    %v735 = vunpack.c.h.b16 %v233
    %v736 = vunpack.c.l.b16 %v234
    %v737 = vunpack.c.h.b16 %v234
    %v738 = vunpack.c.l.b16 %v235
    %v739 = vunpack.c.h.b16 %v235
    %v740 = vunpack.c.l.b16 %v236
    %v741 = vunpack.c.h.b16 %v236
    %v742 = vunpack.c.l.b16 %v237
    %v743 = vunpack.c.h.b16 %v237
    %v744 = vunpack.c.l.b16 %v238
    %v745 = vunpack.c.h.b16 %v238
    %v746 = vunpack.c.l.b16 %v239
    %v747 = vunpack.c.h.b16 %v239
    %v748 = vunpack.c.l.b16 %v240
    %v749 = vunpack.c.h.b16 %v240
    %v750 = vunpack.c.l.b16 %v241
    %v751 = vunpack.c.h.b16 %v241
    %v752 = vunpack.c.l.b16 %v242
    %v753 = vunpack.c.h.b16 %v242
    %v754 = vunpack.c.l.b16 %v243
    %v755 = vunpack.c.h.b16 %v243
    %v756 = vunpack.c.l.b16 %v244
    %v757 = vunpack.c.h.b16 %v244
    %v758 = vunpack.c.l.b16 %v245
    %v759 = vunpack.c.h.b16 %v245
    %v760 = vunpack.c.l.b16 %v246
    %v761 = vunpack.c.h.b16 %v246
    %v762 = vunpack.c.l.b16 %v247
    %v763 = vunpack.c.h.b16 %v247
    %v764 = vunpack.c.l.b16 %v248
    %v765 = vunpack.c.h.b16 %v248
    %v766 = vunpack.c.l.b16 %v249
    %v767 = vunpack.c.h.b16 %v249
    %v768 = vunpack.c.l.b16 %v250
    %v769 = vunpack.c.h.b16 %v250
    %v770 = vunpack.c.l.b16 %v251
    %v771 = vunpack.c.h.b16 %v251
    %v772 = vunpack.c.l.b16 %v252
    %v773 = vunpack.c.h.b16 %v252
    %v774 = vunpack.c.l.b16 %v253
    %v775 = vunpack.c.h.b16 %v253
    %v776 = vunpack.c.l.b16 %v254
    %v777 = vunpack.c.h.b16 %v254
    %v778 = vunpack.c.l.b16 %v255
    %v779 = vunpack.c.h.b16 %v255
    %v780 = vunpack.c.l.b16 %v256
    %v781 = vunpack.c.h.b16 %v256
    %v782 = vunpack.c.l.b16 %v257
    %v783 = vunpack.c.h.b16 %v257
    %v784 = vunpack.c.l.b16 %v258
    %v785 = vunpack.c.h.b16 %v258
    %v786 = vunpack.c.l.b16 %v259
    %v787 = vunpack.c.h.b16 %v259
    %v788 = vunpack.c.l.b16 %v260
    %v789 = vunpack.c.h.b16 %v260
    %v790 = vunpack.c.l.b16 %v261
    %v791 = vunpack.c.h.b16 %v261
    %v792 = vunpack.c.l.b16 %v262
    %v793 = vunpack.c.h.b16 %v262
    %v794 = vunpack.c.l.b16 %v263
    %v795 = vunpack.c.h.b16 %v263
    %v796 = vunpack.c.l.b16 %v264
    %v797 = vunpack.c.h.b16 %v264
    %v798 = vunpack.c.l.b16 %v265
    %v799 = vunpack.c.h.b16 %v265
    %v800 = vunpack.c.l.b16 %v266
    %v801 = vunpack.c.h.b16 %v266
    %v802 = vunpack.c.l.b16 %v267
    %v803 = vunpack.c.h.b16 %v267
    %v804 = vunpack.c.l.b16 %v268
    %v805 = vunpack.c.h.b16 %v268
    %v806 = vunpack.c.l.b16 %v269
    %v807 = vunpack.c.h.b16 %v269
    %v808 = vunpack.c.l.b16 %v270
    %v809 = vunpack.c.h.b16 %v270
    %v810 = vunpack.c.l.b16 %v271
    %v811 = vunpack.c.h.b16 %v271
    %v812 = vunpack.c.l.b16 %v272
    %v813 = vunpack.c.h.b16 %v272
    %v814 = vunpack.c.l.b16 %v273
    %v815 = vunpack.c.h.b16 %v273
    %v816 = vunpack.c.l.b16 %v274
    %v817 = vunpack.c.h.b16 %v274
    %v818 = vunpack.c.l.b16 %v275
    %v819 = vunpack.c.h.b16 %v275
    %v820 = vunpack.c.l.b16 %v276
    %v821 = vunpack.c.h.b16 %v276
    %v822 = vunpack.c.l.b16 %v277
    %v823 = vunpack.c.h.b16 %v277
    %v824 = vunpack.c.l.b16 %v278
    %v825 = vunpack.c.h.b16 %v278
    %v826 = vunpack.c.l.b16 %v279
    %v827 = vunpack.c.h.b16 %v279
    %v828 = vunpack.c.l.b16 %v280
    %v829 = vunpack.c.h.b16 %v280
    %v830 = vunpack.c.l.b16 %v281
    %v831 = vunpack.c.h.b16 %v281
    %v832 = vunpack.c.l.b16 %v282
    %v833 = vunpack.c.h.b16 %v282
    %v834 = vunpack.c.l.b16 %v283
    %v835 = vunpack.c.h.b16 %v283
    %v836 = vunpack.c.l.b16 %v284
    %v837 = vunpack.c.h.b16 %v284
    %v838 = vunpack.c.l.b16 %v285
    %v839 = vunpack.c.h.b16 %v285
    %v840 = vunpack.c.l.b16 %v286
    %v841 = vunpack.c.h.b16 %v286
    %v842 = vunpack.c.l.b16 %v287
    %v843 = vunpack.c.h.b16 %v287
    %v844 = vunpack.c.l.b16 %v288
    %v845 = vunpack.c.h.b16 %v288
    %v846 = vunpack.c.l.b16 %v289
    %v847 = vunpack.c.h.b16 %v289
    %v848 = vunpack.c.l.b16 %v290
    %v849 = vunpack.c.h.b16 %v290
    %v850 = vunpack.c.l.b16 %v291
    %v851 = vunpack.c.h.b16 %v291
    %v852 = vunpack.c.l.b16 %v292
    %v853 = vunpack.c.h.b16 %v292
    %v854 = vunpack.c.l.b16 %v293
    %v855 = vunpack.c.h.b16 %v293
    %v856 = vunpack.c.l.b16 %v294
    %v857 = vunpack.c.h.b16 %v294
    %v858 = vunpack.c.l.b16 %v295
    %v859 = vunpack.c.h.b16 %v295
    %v860 = vunpack.c.l.b16 %v296
    %v861 = vunpack.c.h.b16 %v296
    %v862 = vunpack.c.l.b16 %v297
    %v863 = vunpack.c.h.b16 %v297
    %v864 = vunpack.c.l.b16 %v298
    %v865 = vunpack.c.h.b16 %v298
    %v866 = vunpack.c.l.b16 %v299
    %v867 = vunpack.c.h.b16 %v299
    %v868 = vunpack.c.l.b16 %v300
    %v869 = vunpack.c.h.b16 %v300
    %v870 = vunpack.c.l.b16 %v301
    %v871 = vunpack.c.h.b16 %v301
    %v872 = vunpack.c.l.b16 %v302
    %v873 = vunpack.c.h.b16 %v302
    %v874 = vunpack.c.l.b16 %v303
    %v875 = vunpack.c.h.b16 %v303
    %v876 = vunpack.c.l.b16 %v304
    %v877 = vunpack.c.h.b16 %v304
    %v878 = vunpack.c.l.b16 %v305
    %v879 = vunpack.c.h.b16 %v305
    %v880 = vunpack.c.l.b16 %v306
    %v881 = vunpack.c.h.b16 %v306
    %v882 = vunpack.c.l.b16 %v307
    %v883 = vunpack.c.h.b16 %v307
    %v884 = vunpack.c.l.b16 %v308
    %v885 = vunpack.c.h.b16 %v308
    %v886 = vpack.c.b16 %v504, %v502
    %v887 = vpack.c.b16 %v505, %v503
    %v888 = vpack.c.b16 %v508, %v506
    %v889 = vpack.c.b16 %v509, %v507
    %v890 = vpack.c.b16 %v512, %v510
    %v891 = vpack.c.b16 %v513, %v511
    %v892 = vpack.c.b16 %v516, %v514
    %v893 = vpack.c.b16 %v517, %v515
    %v894 = vpack.c.b16 %v520, %v518
    %v895 = vpack.c.b16 %v521, %v519
    %v896 = vpack.c.b16 %v524, %v522
    %v897 = vpack.c.b16 %v525, %v523
    %v898 = vpack.c.b16 %v528, %v526
    %v899 = vpack.c.b16 %v529, %v527
    %v900 = vpack.c.b16 %v532, %v530
    %v901 = vpack.c.b16 %v533, %v531
    %v902 = vpack.c.b16 %v536, %v534
    %v903 = vpack.c.b16 %v537, %v535
    %v904 = vpack.c.b16 %v540, %v538
    %v905 = vpack.c.b16 %v541, %v539
    %v906 = vpack.c.b16 %v544, %v542
    %v907 = vpack.c.b16 %v545, %v543
    %v908 = vpack.c.b16 %v548, %v546
    %v909 = vpack.c.b16 %v549, %v547
    %v910 = vpack.c.b16 %v552, %v550
    %v911 = vpack.c.b16 %v553, %v551
    %v912 = vpack.c.b16 %v556, %v554
    %v913 = vpack.c.b16 %v557, %v555
    %v914 = vpack.c.b16 %v560, %v558
    %v915 = vpack.c.b16 %v561, %v559
    %v916 = vpack.c.b16 %v564, %v562
    %v917 = vpack.c.b16 %v565, %v563
    %v918 = vpack.c.b16 %v568, %v566
    %v919 = vpack.c.b16 %v569, %v567
    %v920 = vpack.c.b16 %v572, %v570
    %v921 = vpack.c.b16 %v573, %v571
    %v922 = vpack.c.b16 %v576, %v574
    %v923 = vpack.c.b16 %v577, %v575
    %v924 = vpack.c.b16 %v580, %v578
    %v925 = vpack.c.b16 %v581, %v579
    %v926 = vpack.c.b16 %v584, %v582
    %v927 = vpack.c.b16 %v585, %v583
    %v928 = vpack.c.b16 %v588, %v586
    %v929 = vpack.c.b16 %v589, %v587
    %v930 = vpack.c.b16 %v592, %v590
    %v931 = vpack.c.b16 %v593, %v591
    %v932 = vpack.c.b16 %v596, %v594
    %v933 = vpack.c.b16 %v597, %v595
    %v934 = vpack.c.b16 %v600, %v598
    %v935 = vpack.c.b16 %v601, %v599
    %v936 = vpack.c.b16 %v604, %v602
    %v937 = vpack.c.b16 %v605, %v603
    %v938 = vpack.c.b16 %v608, %v606
    %v939 = vpack.c.b16 %v609, %v607
    %v940 = vpack.c.b16 %v612, %v610
    %v941 = vpack.c.b16 %v613, %v611
    %v942 = vpack.c.b16 %v616, %v614
    %v943 = vpack.c.b16 %v617, %v615
    %v944 = vpack.c.b16 %v620, %v618
    %v945 = vpack.c.b16 %v621, %v619
    %v946 = vpack.c.b16 %v624, %v622
    %v947 = vpack.c.b16 %v625, %v623
    %v948 = vpack.c.b16 %v628, %v626
    %v949 = vpack.c.b16 %v629, %v627
    %v950 = vpack.c.b16 %v632, %v630
    %v951 = vpack.c.b16 %v633, %v631
    %v952 = vpack.c.b16 %v636, %v634
    %v953 = vpack.c.b16 %v637, %v635
    %v954 = vpack.c.b16 %v640, %v638
    %v955 = vpack.c.b16 %v641, %v639
    %v956 = vpack.c.b16 %v644, %v642
    %v957 = vpack.c.b16 %v645, %v643
    %v958 = vpack.c.b16 %v648, %v646
    %v959 = vpack.c.b16 %v649, %v647
    %v960 = vpack.c.b16 %v652, %v650
    %v961 = vpack.c.b16 %v653, %v651
    %v962 = vpack.c.b16 %v656, %v654
    %v963 = vpack.c.b16 %v657, %v655
    %v964 = vpack.c.b16 %v660, %v658
    %v965 = vpack.c.b16 %v661, %v659
    %v966 = vpack.c.b16 %v664, %v662
    %v967 = vpack.c.b16 %v665, %v663
    %v968 = vpack.c.b16 %v668, %v666
    %v969 = vpack.c.b16 %v669, %v667
    %v970 = vpack.c.b16 %v672, %v670
    %v971 = vpack.c.b16 %v673, %v671
    %v972 = vpack.c.b16 %v676, %v674
    %v973 = vpack.c.b16 %v677, %v675
    %v974 = vpack.c.b16 %v680, %v678
    %v975 = vpack.c.b16 %v681, %v679
    %v976 = vpack.c.b16 %v684, %v682
    %v977 = vpack.c.b16 %v685, %v683
    %v978 = vpack.c.b16 %v688, %v686
    %v979 = vpack.c.b16 %v689, %v687
    %v980 = vpack.c.b16 %v692, %v690
    %v981 = vpack.c.b16 %v693, %v691
    %v982 = vpack.c.b16 %v696, %v694
    %v983 = vpack.c.b16 %v697, %v695
    %v984 = vpack.c.b16 %v700, %v698
    %v985 = vpack.c.b16 %v701, %v699
    %v986 = vpack.c.b16 %v704, %v702
    %v987 = vpack.c.b16 %v705, %v703
    %v988 = vpack.c.b16 %v708, %v706
    %v989 = vpack.c.b16 %v709, %v707
    %v990 = vpack.c.b16 %v712, %v710
    %v991 = vpack.c.b16 %v713, %v711
    %v992 = vpack.c.b16 %v716, %v714
    %v993 = vpack.c.b16 %v717, %v715
    %v994 = vpack.c.b16 %v720, %v718
    %v995 = vpack.c.b16 %v721, %v719
    %v996 = vpack.c.b16 %v724, %v722
    %v997 = vpack.c.b16 %v725, %v723
    %v998 = vpack.c.b16 %v728, %v726
    %v999 = vpack.c.b16 %v729, %v727
    %v1000 = vpack.c.b16 %v732, %v730
    %v1001 = vpack.c.b16 %v733, %v731
    %v1002 = vpack.c.b16 %v736, %v734
    %v1003 = vpack.c.b16 %v737, %v735
    %v1004 = vpack.c.b16 %v740, %v738
    %v1005 = vpack.c.b16 %v741, %v739
    %v1006 = vpack.c.b16 %v744, %v742
    %v1007 = vpack.c.b16 %v745, %v743
    %v1008 = vpack.c.b16 %v748, %v746
    %v1009 = vpack.c.b16 %v749, %v747
    %v1010 = vpack.c.b16 %v752, %v750
    %v1011 = vpack.c.b16 %v753, %v751
    %v1012 = vpack.c.b16 %v756, %v754
    %v1013 = vpack.c.b16 %v757, %v755
    %v1014 = vpack.c.b16 %v760, %v758
    %v1015 = vpack.c.b16 %v761, %v759
    %v1016 = vpack.c.b16 %v764, %v762
    %v1017 = vpack.c.b16 %v765, %v763
    %v1018 = vpack.c.b16 %v768, %v766
    %v1019 = vpack.c.b16 %v769, %v767
    %v1020 = vpack.c.b16 %v772, %v770
    %v1021 = vpack.c.b16 %v773, %v771
    %v1022 = vpack.c.b16 %v776, %v774
    %v1023 = vpack.c.b16 %v777, %v775
    %v1024 = vpack.c.b16 %v780, %v778
    %v1025 = vpack.c.b16 %v781, %v779
    %v1026 = vpack.c.b16 %v784, %v782
    %v1027 = vpack.c.b16 %v785, %v783
    %v1028 = vpack.c.b16 %v788, %v786
    %v1029 = vpack.c.b16 %v789, %v787
    %v1030 = vpack.c.b16 %v792, %v790
    %v1031 = vpack.c.b16 %v793, %v791
    %v1032 = vpack.c.b16 %v796, %v794
    %v1033 = vpack.c.b16 %v797, %v795
    %v1034 = vpack.c.b16 %v800, %v798
    %v1035 = vpack.c.b16 %v801, %v799
    %v1036 = vpack.c.b16 %v804, %v802
    %v1037 = vpack.c.b16 %v805, %v803
    %v1038 = vpack.c.b16 %v808, %v806
    %v1039 = vpack.c.b16 %v809, %v807
    %v1040 = vpack.c.b16 %v812, %v810
    %v1041 = vpack.c.b16 %v813, %v811
    %v1042 = vpack.c.b16 %v816, %v814
    %v1043 = vpack.c.b16 %v817, %v815
    %v1044 = vpack.c.b16 %v820, %v818
    %v1045 = vpack.c.b16 %v821, %v819
    %v1046 = vpack.c.b16 %v824, %v822
    %v1047 = vpack.c.b16 %v825, %v823
    %v1048 = vpack.c.b16 %v828, %v826
    %v1049 = vpack.c.b16 %v829, %v827
    %v1050 = vpack.c.b16 %v832, %v830
    %v1051 = vpack.c.b16 %v833, %v831
    %v1052 = vpack.c.b16 %v836, %v834
    %v1053 = vpack.c.b16 %v837, %v835
    %v1054 = vpack.c.b16 %v840, %v838
    %v1055 = vpack.c.b16 %v841, %v839
    %v1056 = vpack.c.b16 %v844, %v842
    %v1057 = vpack.c.b16 %v845, %v843
    %v1058 = vpack.c.b16 %v848, %v846
    %v1059 = vpack.c.b16 %v849, %v847
    %v1060 = vpack.c.b16 %v852, %v850
    %v1061 = vpack.c.b16 %v853, %v851
    %v1062 = vpack.c.b16 %v856, %v854
    %v1063 = vpack.c.b16 %v857, %v855
    %v1064 = vpack.c.b16 %v860, %v858
    %v1065 = vpack.c.b16 %v861, %v859
    %v1066 = vpack.c.b16 %v864, %v862
    %v1067 = vpack.c.b16 %v865, %v863
    %v1068 = vpack.c.b16 %v868, %v866
    %v1069 = vpack.c.b16 %v869, %v867
    %v1070 = vpack.c.b16 %v872, %v870
    %v1071 = vpack.c.b16 %v873, %v871
    %v1072 = vpack.c.b16 %v876, %v874
    %v1073 = vpack.c.b16 %v877, %v875
    %v1074 = vpack.c.b16 %v880, %v878
    %v1075 = vpack.c.b16 %v881, %v879
    %v1076 = vpack.c.b16 %v884, %v882
    %v1077 = vpack.c.b16 %v885, %v883
    %v1271 = vlaneseq
    %v1272 = vshrl.u32 %v1271, 7
    %v1273 = vsub.s32 0, %v1272
    %v1274 = vrot.slane %v309, %v1273
    %v1275 = vlaneseq
    %v1276 = vshrl.u32 %v1275, 7
    %v1277 = vsub.s32 1, %v1276
    %v1278 = vrot.slane %v309, %v1277
    %1281 = vmatprep.subr.bf16.mxu0 %v887
    %1282 = vmatpush1.bf16.msra.mxu0 %v886
    %1283 = vmatprep.subr.bf16.mxu0 %v889
    %1284 = vmatpush1.bf16.msra.mxu0 %v888
    %1285 = vmatprep.subr.bf16.mxu0 %v891
    %1286 = vmatpush1.bf16.msra.mxu0 %v890
    %1287 = vmatprep.subr.bf16.mxu0 %v893
    %1288 = vmatpush1.bf16.msra.mxu0 %v892
    %1289 = vmatprep.subr.bf16.mxu0 %v895
    %1290 = vmatpush1.bf16.msra.mxu0 %v894
    %1291 = vmatprep.subr.bf16.mxu0 %v897
    %1292 = vmatpush1.bf16.msra.mxu0 %v896
    %1293 = vmatprep.subr.bf16.mxu0 %v899
    %1294 = vmatpush1.bf16.msra.mxu0 %v898
    %1295 = vmatprep.subr.bf16.mxu0 %v901
    %1296 = vmatpush1.bf16.msra.mxu0 %v900
    %1297 = vmatprep.subr.bf16.mxu0 %v903
    %1298 = vmatpush1.bf16.msra.mxu0 %v902
    %1299 = vmatprep.subr.bf16.mxu0 %v905
    %1300 = vmatpush1.bf16.msra.mxu0 %v904
    %1301 = vmatprep.subr.bf16.mxu0 %v907
    %1302 = vmatpush1.bf16.msra.mxu0 %v906
    %1303 = vmatprep.subr.bf16.mxu0 %v909
    %1304 = vmatpush1.bf16.msra.mxu0 %v908
    %1305 = vmatprep.subr.bf16.mxu0 %v911
    %1306 = vmatpush1.bf16.msra.mxu0 %v910
    %1307 = vmatprep.subr.bf16.mxu0 %v913
    %1308 = vmatpush1.bf16.msra.mxu0 %v912
    %1309 = vmatprep.subr.bf16.mxu0 %v915
    %1310 = vmatpush1.bf16.msra.mxu0 %v914
    %1311 = vmatprep.subr.bf16.mxu0 %v917
    %1312 = vmatpush1.bf16.msra.mxu0 %v916
    %1313 = vmatprep.mubr.bf16.mxu0 %v106
    %1314 = vmatmul.mubr.bf16.gmra.mrb[0].mxu0 %v105
    %v1315 = vpop.f32.mrb[0].mxu0
    %v1316 = vadd.f32 %v1274, %v1315
    %v1317 = vpop.f32.mrb[0].mxu0
    %v1318 = vadd.f32 %v1278, %v1317
    %v1319 = vpop.f32.mrb[0].mxu0
    %v1320 = vpop.f32.mrb[0].mxu0
    %1321 = vdwg.mxu0
    %1322 = vmatprep.subr.bf16.mxu0 %v919
    %1323 = vmatpush1.bf16.msra.mxu0 %v918
    %1324 = vmatprep.subr.bf16.mxu0 %v921
    %1325 = vmatpush1.bf16.msra.mxu0 %v920
    %1326 = vmatprep.subr.bf16.mxu0 %v923
    %1327 = vmatpush1.bf16.msra.mxu0 %v922
    %1328 = vmatprep.subr.bf16.mxu0 %v925
    %1329 = vmatpush1.bf16.msra.mxu0 %v924
    %1330 = vmatprep.subr.bf16.mxu0 %v927
    %1331 = vmatpush1.bf16.msra.mxu0 %v926
    %1332 = vmatprep.subr.bf16.mxu0 %v929
    %1333 = vmatpush1.bf16.msra.mxu0 %v928
    %1334 = vmatprep.subr.bf16.mxu0 %v931
    %1335 = vmatpush1.bf16.msra.mxu0 %v930
    %1336 = vmatprep.subr.bf16.mxu0 %v933
    %1337 = vmatpush1.bf16.msra.mxu0 %v932
    %1338 = vmatprep.subr.bf16.mxu0 %v935
    %1339 = vmatpush1.bf16.msra.mxu0 %v934
    %1340 = vmatprep.subr.bf16.mxu0 %v937
    %1341 = vmatpush1.bf16.msra.mxu0 %v936
    %1342 = vmatprep.subr.bf16.mxu0 %v939
    %1343 = vmatpush1.bf16.msra.mxu0 %v938
    %1344 = vmatprep.subr.bf16.mxu0 %v941
    %1345 = vmatpush1.bf16.msra.mxu0 %v940
    %1346 = vmatprep.subr.bf16.mxu0 %v943
    %1347 = vmatpush1.bf16.msra.mxu0 %v942
    %1348 = vmatprep.subr.bf16.mxu0 %v945
    %1349 = vmatpush1.bf16.msra.mxu0 %v944
    %1350 = vmatprep.subr.bf16.mxu0 %v947
    %1351 = vmatpush1.bf16.msra.mxu0 %v946
    %1352 = vmatprep.subr.bf16.mxu0 %v949
    %1353 = vmatpush1.bf16.msra.mxu0 %v948
    %1354 = vmatprep.mubr.bf16.mxu0 %v108
    %1355 = vmatmul.mubr.bf16.gmra.mrb[0].mxu0 %v107
    %v1356 = vpop.f32.mrb[0].mxu0
    %v1357 = vadd.f32 %v1316, %v1356
    %v1358 = vpop.f32.mrb[0].mxu0
    %v1359 = vadd.f32 %v1318, %v1358
    %v1360 = vpop.f32.mrb[0].mxu0
    %v1361 = vpop.f32.mrb[0].mxu0
    %1362 = vdwg.mxu0
    %1363 = vmatprep.subr.bf16.mxu0 %v951
    %1364 = vmatpush1.bf16.msra.mxu0 %v950
    %1365 = vmatprep.subr.bf16.mxu0 %v953
    %1366 = vmatpush1.bf16.msra.mxu0 %v952
    %1367 = vmatprep.subr.bf16.mxu0 %v955
    %1368 = vmatpush1.bf16.msra.mxu0 %v954
    %1369 = vmatprep.subr.bf16.mxu0 %v957
    %1370 = vmatpush1.bf16.msra.mxu0 %v956
    %1371 = vmatprep.subr.bf16.mxu0 %v959
    %1372 = vmatpush1.bf16.msra.mxu0 %v958
    %1373 = vmatprep.subr.bf16.mxu0 %v961
    %1374 = vmatpush1.bf16.msra.mxu0 %v960
    %1375 = vmatprep.subr.bf16.mxu0 %v963
    %1376 = vmatpush1.bf16.msra.mxu0 %v962
    %1377 = vmatprep.subr.bf16.mxu0 %v965
    %1378 = vmatpush1.bf16.msra.mxu0 %v964
    %1379 = vmatprep.subr.bf16.mxu0 %v967
    %1380 = vmatpush1.bf16.msra.mxu0 %v966
    %1381 = vmatprep.subr.bf16.mxu0 %v969
    %1382 = vmatpush1.bf16.msra.mxu0 %v968
    %1383 = vmatprep.subr.bf16.mxu0 %v971
    %1384 = vmatpush1.bf16.msra.mxu0 %v970
    %1385 = vmatprep.subr.bf16.mxu0 %v973
    %1386 = vmatpush1.bf16.msra.mxu0 %v972
    %1387 = vmatprep.subr.bf16.mxu0 %v975
    %1388 = vmatpush1.bf16.msra.mxu0 %v974
    %1389 = vmatprep.subr.bf16.mxu0 %v977
    %1390 = vmatpush1.bf16.msra.mxu0 %v976
    %1391 = vmatprep.subr.bf16.mxu0 %v979
    %1392 = vmatpush1.bf16.msra.mxu0 %v978
    %1393 = vmatprep.subr.bf16.mxu0 %v981
    %1394 = vmatpush1.bf16.msra.mxu0 %v980
    %1395 = vmatprep.mubr.bf16.mxu0 %v110
    %1396 = vmatmul.mubr.bf16.gmra.mrb[0].mxu0 %v109
    %v1397 = vpop.f32.mrb[0].mxu0
    %v1398 = vadd.f32 %v1357, %v1397
    %v1399 = vpop.f32.mrb[0].mxu0
    %v1400 = vadd.f32 %v1359, %v1399
    %v1401 = vpop.f32.mrb[0].mxu0
    %v1402 = vpop.f32.mrb[0].mxu0
    %1403 = vdwg.mxu0
    %1404 = vmatprep.subr.bf16.mxu0 %v983
    %1405 = vmatpush1.bf16.msra.mxu0 %v982
    %1406 = vmatprep.subr.bf16.mxu0 %v985
    %1407 = vmatpush1.bf16.msra.mxu0 %v984
    %1408 = vmatprep.subr.bf16.mxu0 %v987
    %1409 = vmatpush1.bf16.msra.mxu0 %v986
    %1410 = vmatprep.subr.bf16.mxu0 %v989
    %1411 = vmatpush1.bf16.msra.mxu0 %v988
    %1412 = vmatprep.subr.bf16.mxu0 %v991
    %1413 = vmatpush1.bf16.msra.mxu0 %v990
    %1414 = vmatprep.subr.bf16.mxu0 %v993
    %1415 = vmatpush1.bf16.msra.mxu0 %v992
    %1416 = vmatprep.subr.bf16.mxu0 %v995
    %1417 = vmatpush1.bf16.msra.mxu0 %v994
    %1418 = vmatprep.subr.bf16.mxu0 %v997
    %1419 = vmatpush1.bf16.msra.mxu0 %v996
    %1420 = vmatprep.subr.bf16.mxu0 %v999
    %1421 = vmatpush1.bf16.msra.mxu0 %v998
    %1422 = vmatprep.subr.bf16.mxu0 %v1001
    %1423 = vmatpush1.bf16.msra.mxu0 %v1000
    %1424 = vmatprep.subr.bf16.mxu0 %v1003
    %1425 = vmatpush1.bf16.msra.mxu0 %v1002
    %1426 = vmatprep.subr.bf16.mxu0 %v1005
    %1427 = vmatpush1.bf16.msra.mxu0 %v1004
    %1428 = vmatprep.subr.bf16.mxu0 %v1007
    %1429 = vmatpush1.bf16.msra.mxu0 %v1006
    %1430 = vmatprep.subr.bf16.mxu0 %v1009
    %1431 = vmatpush1.bf16.msra.mxu0 %v1008
    %1432 = vmatprep.subr.bf16.mxu0 %v1011
    %1433 = vmatpush1.bf16.msra.mxu0 %v1010
    %1434 = vmatprep.subr.bf16.mxu0 %v1013
    %1435 = vmatpush1.bf16.msra.mxu0 %v1012
    %1436 = vmatprep.mubr.bf16.mxu0 %v112
    %1437 = vmatmul.mubr.bf16.gmra.mrb[0].mxu0 %v111
    %v1438 = vpop.f32.mrb[0].mxu0
    %v1439 = vadd.f32 %v1398, %v1438
    %v1440 = vpop.f32.mrb[0].mxu0
    %v1441 = vadd.f32 %v1400, %v1440
    %v1442 = vpop.f32.mrb[0].mxu0
    %v1443 = vpop.f32.mrb[0].mxu0
    %1444 = vdwg.mxu0
    %1445 = vmatprep.subr.bf16.mxu0 %v1015
    %1446 = vmatpush1.bf16.msra.mxu0 %v1014
    %1447 = vmatprep.subr.bf16.mxu0 %v1017
    %1448 = vmatpush1.bf16.msra.mxu0 %v1016
    %1449 = vmatprep.subr.bf16.mxu0 %v1019
    %1450 = vmatpush1.bf16.msra.mxu0 %v1018
    %1451 = vmatprep.subr.bf16.mxu0 %v1021
    %1452 = vmatpush1.bf16.msra.mxu0 %v1020
    %1453 = vmatprep.subr.bf16.mxu0 %v1023
    %1454 = vmatpush1.bf16.msra.mxu0 %v1022
    %1455 = vmatprep.subr.bf16.mxu0 %v1025
    %1456 = vmatpush1.bf16.msra.mxu0 %v1024
    %1457 = vmatprep.subr.bf16.mxu0 %v1027
    %1458 = vmatpush1.bf16.msra.mxu0 %v1026
    %1459 = vmatprep.subr.bf16.mxu0 %v1029
    %1460 = vmatpush1.bf16.msra.mxu0 %v1028
    %1461 = vmatprep.subr.bf16.mxu0 %v1031
    %1462 = vmatpush1.bf16.msra.mxu0 %v1030
    %1463 = vmatprep.subr.bf16.mxu0 %v1033
    %1464 = vmatpush1.bf16.msra.mxu0 %v1032
    %1465 = vmatprep.subr.bf16.mxu0 %v1035
    %1466 = vmatpush1.bf16.msra.mxu0 %v1034
    %1467 = vmatprep.subr.bf16.mxu0 %v1037
    %1468 = vmatpush1.bf16.msra.mxu0 %v1036
    %1469 = vmatprep.subr.bf16.mxu0 %v1039
    %1470 = vmatpush1.bf16.msra.mxu0 %v1038
    %1471 = vmatprep.subr.bf16.mxu0 %v1041
    %1472 = vmatpush1.bf16.msra.mxu0 %v1040
    %1473 = vmatprep.subr.bf16.mxu0 %v1043
    %1474 = vmatpush1.bf16.msra.mxu0 %v1042
    %1475 = vmatprep.subr.bf16.mxu0 %v1045
    %1476 = vmatpush1.bf16.msra.mxu0 %v1044
    %1477 = vmatprep.mubr.bf16.mxu0 %v114
    %1478 = vmatmul.mubr.bf16.gmra.mrb[0].mxu0 %v113
    %v1479 = vpop.f32.mrb[0].mxu0
    %v1480 = vadd.f32 %v1439, %v1479
    %v1481 = vpop.f32.mrb[0].mxu0
    %v1482 = vadd.f32 %v1441, %v1481
    %v1483 = vpop.f32.mrb[0].mxu0
    %v1484 = vpop.f32.mrb[0].mxu0
    %1485 = vdwg.mxu0
    %1486 = vmatprep.subr.bf16.mxu0 %v1047
    %1487 = vmatpush1.bf16.msra.mxu0 %v1046
    %1488 = vmatprep.subr.bf16.mxu0 %v1049
    %1489 = vmatpush1.bf16.msra.mxu0 %v1048
    %1490 = vmatprep.subr.bf16.mxu0 %v1051
    %1491 = vmatpush1.bf16.msra.mxu0 %v1050
    %1492 = vmatprep.subr.bf16.mxu0 %v1053
    %1493 = vmatpush1.bf16.msra.mxu0 %v1052
    %1494 = vmatprep.subr.bf16.mxu0 %v1055
    %1495 = vmatpush1.bf16.msra.mxu0 %v1054
    %1496 = vmatprep.subr.bf16.mxu0 %v1057
    %1497 = vmatpush1.bf16.msra.mxu0 %v1056
    %1498 = vmatprep.subr.bf16.mxu0 %v1059
    %1499 = vmatpush1.bf16.msra.mxu0 %v1058
    %1500 = vmatprep.subr.bf16.mxu0 %v1061
    %1501 = vmatpush1.bf16.msra.mxu0 %v1060
    %1502 = vmatprep.subr.bf16.mxu0 %v1063
    %1503 = vmatpush1.bf16.msra.mxu0 %v1062
    %1504 = vmatprep.subr.bf16.mxu0 %v1065
    %1505 = vmatpush1.bf16.msra.mxu0 %v1064
    %1506 = vmatprep.subr.bf16.mxu0 %v1067
    %1507 = vmatpush1.bf16.msra.mxu0 %v1066
    %1508 = vmatprep.subr.bf16.mxu0 %v1069
    %1509 = vmatpush1.bf16.msra.mxu0 %v1068
    %1510 = vmatprep.subr.bf16.mxu0 %v1071
    %1511 = vmatpush1.bf16.msra.mxu0 %v1070
    %1512 = vmatprep.subr.bf16.mxu0 %v1073
    %1513 = vmatpush1.bf16.msra.mxu0 %v1072
    %1514 = vmatprep.subr.bf16.mxu0 %v1075
    %1515 = vmatpush1.bf16.msra.mxu0 %v1074
    %1516 = vmatprep.subr.bf16.mxu0 %v1077
    %1517 = vmatpush1.bf16.msra.mxu0 %v1076
    %1518 = vmatprep.mubr.bf16.mxu0 %v116
    %1519 = vmatmul.mubr.bf16.gmra.mrb[0].mxu0 %v115
    %v1520 = vpop.f32.mrb[0].mxu0
    %v1521 = vadd.f32 %v1480, %v1520
    %v1522 = vpop.f32.mrb[0].mxu0
    %v1523 = vadd.f32 %v1482, %v1522
    %v1524 = vpop.f32.mrb[0].mxu0
    %v1525 = vpop.f32.mrb[0].mxu0
    %1526 = vdwg.mxu0
    %v1529 = vcombine.low %v1521, %v1523
    %v1531 = vunpack.c.l.s4 1966171168
    %v1532 = vunpack.c.0.s8 %v1531
    %v1533 = vlaneseq
    %v1534 = vshrl.u32 %v1533, 7
    %v1535 = vsub.s32 %v1532, %v1534
    %v1536 = vrot.slane %v1529, %v1535
    %v1538 = vunpack.c.l.s4 1966171168
    %v1539 = vunpack.c.0.s8 %v1538
    %v1540 = vlaneseq
    %v1541 = vshrl.u32 %v1540, 7
    %v1542 = vsub.s32 %v1539, %v1541
    %v1543 = vrot.slane %v1536, %v1542
    %v1545 = vlaneseq
    %vm1546 = vcmp.ge.s32.totalorder %v1545, 0
    %vm1547 = vcmp.lt.s32.totalorder %v1545, 256
    %vm1548 = vmand %vm1546, %vm1547
    %1549 = vst.msk [vmem:[#allocation7] sm:$0x3] %vm1548, %v1543
    // Predicated region
    $region22: #{tpu_custom_call.1} parent=1 // pred_check
      _
    $region23: #{tpu_custom_call.1} parent=1 // pred_check_branch
      %1551 = sbr.rel (0) target = $region25
    $region24: #{tpu_custom_call.1} parent=1 // pred_region
      %s1553 = ssub.s32 32, 32
      %1554 = vsyncadd [#allocation4], %s1553
      %s1556 = sshll.u32 [#allocation7], 4
      %s1557 = int_to_ptr.vmem [resolvable:$true] %s1556
      %1559 = dma.vmem_to_hbm [thread:$0]  %s1557, 32, %s3, [#allocation4]
    $region25: #{tpu_custom_call.1} parent=1 // pred_fallthru
      _
    // Predicated region
    $region26: #{tpu_custom_call.1} parent=1 // pred_check
      _
    $region27: #{tpu_custom_call.1} parent=1 // pred_check_branch
      %1561 = sbr.rel (0) target = $region29
    $region28: #{tpu_custom_call.1} parent=1 // pred_region
      %1562 = dma.done [#allocation4], 32
    $region29: #{tpu_custom_call.1} parent=1 // pred_fallthru
      _
    %1563 = vsyncpa [#allocation3], 1
    %1564 = vsyncpa [#allocation6], 1
    %1565 = vsyncpa [#allocation4], 1

</llo_original>
